<compile_context>
chip_gen: v7x
topology: tpu7x:2x2x1
jax: 0.10.0
libtpu: 0.0.40
codegen_flags: <defaults>
</compile_context>

<pallas_src>
import functools

import jax
import jax.numpy as jnp
from jax.experimental import pallas as pl
from jax.experimental.pallas import tpu as pltpu

EPS = 1e-6                      # F.pairwise_distance default eps
_VMEM_BUDGET = 8 * 1024 * 1024  # bytes for double-buffered activation tiles (safe on all gens)


def _contrastive_loss_kernel(o1_ref, o2_ref, label_ref, out_ref, acc_ref, *,
                             margin, batch, block_b, mask_tail, use_mxu_reduce):
    step = pl.program_id(0)

    @pl.when(step == 0)
    def _init():
        acc_ref[...] = jnp.zeros_like(acc_ref)

    # Cast AFTER the DMA: HBM traffic stays at the input dtype's width.
    o1 = o1_ref[...].astype(jnp.float32)        # [TB, C]
    o2 = o2_ref[...].astype(jnp.float32)        # [TB, C]
    lab = label_ref[...].astype(jnp.float32)    # [TB, 1]

    diff = o1 - o2 + jnp.float32(EPS)
    dsq = diff * diff
    if use_mxu_reduce:
        # Wide C: do the cross-lane reduction on the (otherwise idle) MXU.
        ones = jnp.ones((dsq.shape[-1], 1), jnp.float32)
        sq_sum = jnp.dot(dsq, ones, preferred_element_type=jnp.float32)   # [TB, 1]
    else:
        sq_sum = jnp.sum(dsq, axis=-1, keepdims=True)                     # [TB, 1]

    # sq_sum == d^2, so the positive branch never waits on the sqrt (EUP).
    dist = jnp.sqrt(sq_sum)                                               # [TB, 1]
    hinge = jnp.maximum(jnp.float32(margin) - dist, 0.0)
    per_sample = (1.0 - lab) * sq_sum + lab * (hinge * hinge)             # [TB, 1]

    if mask_tail:
        # B % block_b != 0: zero out the out-of-range rows of the last tile.
        rows = step * block_b + jax.lax.broadcasted_iota(jnp.int32, per_sample.shape, 0)
        per_sample = jnp.where(rows < batch, per_sample, 0.0)

    acc_ref[...] += jnp.sum(per_sample, axis=0, keepdims=True)

    @pl.when(step == pl.num_programs(0) - 1)
    def _finalize():
        out_ref[...] = acc_ref[...] * jnp.float32(1.0 / batch)            # torch.mean


def _pick_block_b(batch, feat, itemsize):
    """Largest batch tile whose double-buffered inputs fit the VMEM budget."""
    rows = _VMEM_BUDGET // max(1, 4 * feat * itemsize)   # 2 inputs x 2 pipeline buffers
    rows = min(rows, 1024)
    if rows >= batch:
        return batch                    # full-extent tile (no (8,128) constraint)
    return max(8, (rows // 8) * 8)      # tiled: sublane-aligned block


def contrastive_loss(output1, output2, label, *, margin=2.0, block_b=None):
    """output1/output2: [B, C, H, W] (NCHW); label: [B]. Returns scalar f32 loss."""
    B, C, H, W = output1.shape
    # Only spatial position (0,0) is used. For the siamese head H=W=1, so this is a
    # zero-copy reshape; dtype is preserved so the kernel DMA carries the native width.
    if H == 1 and W == 1:
        o1 = output1.reshape(B, C)
        o2 = output2.reshape(B, C)
    else:
        o1 = output1[:, :, 0, 0]
        o2 = output2[:, :, 0, 0]
    lab = label.reshape(B, 1)

    if block_b is None:
        block_b = _pick_block_b(B, C, o1.dtype.itemsize)
    nb = pl.cdiv(B, block_b)

    kernel = functools.partial(
        _contrastive_loss_kernel,
        margin=float(margin),            # static hyperparameter, specialized at trace time
        batch=B,
        block_b=block_b,
        mask_tail=(B % block_b != 0),
        use_mxu_reduce=(C >= 512),
    )

    out = pl.pallas_call(
        kernel,
        out_shape=jax.ShapeDtypeStruct((1, 1), jnp.float32),
        grid_spec=pltpu.PrefetchScalarGridSpec(
            num_scalar_prefetch=0,
            grid=(nb,),
            in_specs=[
                pl.BlockSpec((block_b, C), lambda i: (i, 0)),
                pl.BlockSpec((block_b, C), lambda i: (i, 0)),
                pl.BlockSpec((block_b, 1), lambda i: (i, 0)),
            ],
            out_specs=pl.BlockSpec((1, 1), lambda i: (0, 0)),
            scratch_shapes=[pltpu.VMEM((1, 1), jnp.float32)],
        ),
        compiler_params=pltpu.CompilerParams(
            dimension_semantics=("arbitrary",)),   # B-tiles reduce into one accumulator
    )(o1, o2, lab)
    return out[0, 0]


def _reference(output1, output2, label, margin=2.0):
    # Pure-JAX reference mirroring the PyTorch forward.
    o1 = output1[:, :, 0, 0].astype(jnp.float32)
    o2 = output2[:, :, 0, 0].astype(jnp.float32)
    d = jnp.sqrt(jnp.sum((o1 - o2 + EPS) ** 2, axis=-1))
    lab = label.astype(jnp.float32)
    return jnp.mean((1.0 - lab) * d ** 2 + lab * jnp.maximum(margin - d, 0.0) ** 2)


if __name__ == "__main__":
    key = jax.random.PRNGKey(0)
    k1, k2, k3 = jax.random.split(key, 3)

    B, C, H, W = 8, 32, 1, 1  # siamese network head output: [B, C, 1, 1]
    output1 = jax.random.normal(k1, (B, C, H, W), dtype=jnp.float32)
    output2 = jax.random.normal(k2, (B, C, H, W), dtype=jnp.float32)
    label = jax.random.bernoulli(k3, p=0.5, shape=(B,)).astype(jnp.float32)

    loss = contrastive_loss(output1, output2, label)
    loss = jax.block_until_ready(loss)

    ref = _reference(output1, output2, label)
    assert jnp.allclose(loss, ref, rtol=1e-5, atol=1e-5), (loss, ref)

    print("KERNEL_OK")
</pallas_src>

<mosaic_0001>
module attributes {stable_mosaic.version = 11 : i64} {
  func.func @_contrastive_loss_kernel(%arg0: i32, %arg1: memref<8x32xf32, #tpu.memory_space<vmem>>, %arg2: memref<8x32xf32, #tpu.memory_space<vmem>>, %arg3: memref<8x1xf32, #tpu.memory_space<vmem>>, %arg4: memref<1x1xf32, #tpu.memory_space<vmem>>, %arg5: memref<1x1xf32, #tpu.memory_space<vmem>>) attributes {dimension_semantics = [#tpu.dimension_semantics<arbitrary>], iteration_bounds = array<i64: 1>, scalar_prefetch = 0 : i64, scratch_operands = 1 : i64, tpu.core_type = #tpu.core_type<tc>, window_params = [{transform_indices = @transform_0, window_bounds = array<i64: 8, 32>}, {transform_indices = @transform_1, window_bounds = array<i64: 8, 32>}, {transform_indices = @transform_2, window_bounds = array<i64: 8, 1>}, {pipeline_mode = #tpu.pipeline_mode<synchronous>, transform_indices = @transform_3, window_bounds = array<i64: 1, 1>}]} {
    %c0_i32 = arith.constant 0 : i32
    %0 = arith.cmpi eq, %arg0, %c0_i32 : i32
    %1 = arith.extui %0 : i1 to i32
    %c0_i32_0 = arith.constant 0 : i32
    %2 = arith.cmpi ne, %1, %c0_i32_0 : i32
    scf.if %2 {
      %cst_17 = arith.constant 0.000000e+00 : f32
      %31 = vector.broadcast %cst_17 : f32 to vector<1x1xf32>
      %c0_18 = arith.constant 0 : index
      %c0_19 = arith.constant 0 : index
      %32 = vector.load %arg5[%c0_18, %c0_19] : memref<1x1xf32, #tpu.memory_space<vmem>>, vector<1x1xf32>
      tpu.vector_store %arg5[%c0_18, %c0_19], %31 {strides = array<i32>} : memref<1x1xf32, #tpu.memory_space<vmem>>, vector<1x1xf32>,
    } else {
    }
    %c0 = arith.constant 0 : index
    %c0_1 = arith.constant 0 : index
    %3 = vector.load %arg1[%c0, %c0_1] : memref<8x32xf32, #tpu.memory_space<vmem>>, vector<8x32xf32>
    %c0_2 = arith.constant 0 : index
    %c0_3 = arith.constant 0 : index
    %4 = vector.load %arg2[%c0_2, %c0_3] : memref<8x32xf32, #tpu.memory_space<vmem>>, vector<8x32xf32>
    %c0_4 = arith.constant 0 : index
    %c0_5 = arith.constant 0 : index
    %5 = vector.load %arg3[%c0_4, %c0_5] : memref<8x1xf32, #tpu.memory_space<vmem>>, vector<8x1xf32>
    %6 = arith.subf %3, %4 : vector<8x32xf32>
    %cst = arith.constant 9.99999997E-7 : f32
    %7 = vector.broadcast %cst : f32 to vector<8x32xf32>
    %8 = arith.addf %6, %7 : vector<8x32xf32>
    %9 = arith.mulf %8, %8 : vector<8x32xf32>
    %cst_6 = arith.constant dense<0.000000e+00> : vector<8xf32>
    %10 = vector.multi_reduction <add>, %9, %cst_6 [1] : vector<8x32xf32> to vector<8xf32>
    %11 = vector.shape_cast %10 : vector<8xf32> to vector<8x1xf32>
    %12 = math.sqrt %11 : vector<8x1xf32>
    %cst_7 = arith.constant 2.000000e+00 : f32
    %13 = vector.broadcast %cst_7 : f32 to vector<8x1xf32>
    %14 = arith.subf %13, %12 : vector<8x1xf32>
    %cst_8 = arith.constant 0.000000e+00 : f32
    %15 = vector.broadcast %cst_8 : f32 to vector<8x1xf32>
    %16 = arith.maximumf %14, %15 : vector<8x1xf32>
    %cst_9 = arith.constant 1.000000e+00 : f32
    %17 = vector.broadcast %cst_9 : f32 to vector<8x1xf32>
    %18 = arith.subf %17, %5 : vector<8x1xf32>
    %19 = arith.mulf %18, %11 : vector<8x1xf32>
    %20 = arith.mulf %16, %16 : vector<8x1xf32>
    %21 = arith.mulf %5, %20 : vector<8x1xf32>
    %22 = arith.addf %19, %21 : vector<8x1xf32>
    %c0_10 = arith.constant 0 : index
    %c0_11 = arith.constant 0 : index
    %23 = vector.load %arg5[%c0_10, %c0_11] : memref<1x1xf32, #tpu.memory_space<vmem>>, vector<1x1xf32>
    %cst_12 = arith.constant dense<0.000000e+00> : vector<1xf32>
    %24 = vector.multi_reduction <add>, %22, %cst_12 [0] : vector<8x1xf32> to vector<1xf32>
    %25 = vector.shape_cast %24 : vector<1xf32> to vector<1x1xf32>
    %26 = arith.addf %23, %25 : vector<1x1xf32>
    %c0_13 = arith.constant 0 : index
    %c0_14 = arith.constant 0 : index
    %27 = vector.load %arg5[%c0_13, %c0_14] : memref<1x1xf32, #tpu.memory_space<vmem>>, vector<1x1xf32>
    tpu.vector_store %arg5[%c0_13, %c0_14], %26 {strides = array<i32>} : memref<1x1xf32, #tpu.memory_space<vmem>>, vector<1x1xf32>,
    %c0_i32_15 = arith.constant 0 : i32
    %28 = arith.cmpi eq, %arg0, %c0_i32_15 : i32
    %29 = arith.extui %28 : i1 to i32
    %c0_i32_16 = arith.constant 0 : i32
    %30 = arith.cmpi ne, %29, %c0_i32_16 : i32
    scf.if %30 {
      %c0_17 = arith.constant 0 : index
      %c0_18 = arith.constant 0 : index
      %31 = vector.load %arg5[%c0_17, %c0_18] : memref<1x1xf32, #tpu.memory_space<vmem>>, vector<1x1xf32>
      %cst_19 = arith.constant 1.250000e-01 : f32
      %32 = vector.broadcast %cst_19 : f32 to vector<1x1xf32>
      %33 = arith.mulf %31, %32 : vector<1x1xf32>
      %c0_20 = arith.constant 0 : index
      %c0_21 = arith.constant 0 : index
      %34 = vector.load %arg4[%c0_20, %c0_21] : memref<1x1xf32, #tpu.memory_space<vmem>>, vector<1x1xf32>
      tpu.vector_store %arg4[%c0_20, %c0_21], %33 {strides = array<i32>} : memref<1x1xf32, #tpu.memory_space<vmem>>, vector<1x1xf32>,
    } else {
    }
    return
  }
  func.func @transform_0(%arg0: i32) -> (i32, i32) {
    %c0_i32 = arith.constant 0 : i32
    %c0_i32_0 = arith.constant 0 : i32
    return %arg0, %c0_i32 : i32, i32
  }
  func.func @transform_1(%arg0: i32) -> (i32, i32) {
    %c0_i32 = arith.constant 0 : i32
    %c0_i32_0 = arith.constant 0 : i32
    return %arg0, %c0_i32 : i32, i32
  }
  func.func @transform_2(%arg0: i32) -> (i32, i32) {
    %c0_i32 = arith.constant 0 : i32
    %c0_i32_0 = arith.constant 0 : i32
    return %arg0, %c0_i32 : i32, i32
  }
  func.func @transform_3(%arg0: i32) -> (i32, i32) {
    %c0_i32 = arith.constant 0 : i32
    %c0_i32_0 = arith.constant 0 : i32
    %c0_i32_1 = arith.constant 0 : i32
    return %c0_i32, %c0_i32_0 : i32, i32
  }
}

</mosaic_0001>

<llo_original>
// kernel: tpu_custom_call.1
$region0: #{tpu_custom_call.1}
  #allocation0 [shape = 'u32[]', space=smem, size = 0x4, offset = 0x4, fixed_abs, tag = 'smem constant byte address 0x4 - core index']
  #allocation1 [shape = 'u32[144,128]{1,0:T(1,128)}', space=vmem, size = 0x12000, scoped, tag = 'internal scratch']
  #allocation2 [shape = 'f32[1,1]{1,0:T(1,128)}', space=vmem, size = 0x200, scoped, tag = 'scratch operand']
  %s0 = inlined_call_operand.vmem [shape: f32[8,32], index: 0, kind: input, shape index: {}]
  %s1 = inlined_call_operand.hbm [shape: f32[8,32], index: 1, kind: input, shape index: {}]
  %s2 = inlined_call_operand.vmem [shape: f32[8,1], index: 2, kind: input, shape index: {}]
  %s3 = inlined_call_operand.hbm [shape: f32[1,1], index: 3, kind: output, shape index: {}]
  %s4 = sld [smem:[#allocation0]]
  $region34: #{tpu_custom_call.1} parent=0
    _
  %s6 = ssub.s32 1, %s4
  %s7 = scalar_select 0, %s6, %s4
  $region1: #{tpu_custom_call.1} parent=0
    #allocation3 [shape = 'u8[4096]{0}', space=vmem, size = 0x1000, scoped, tag = 'input window, operand 1, single buffered']
    #allocation4 [shape = 's32[1]{0}', space=sflag, size = 0x4, scoped, tag = 'scoped memory for tpu_custom_call.1']
    #allocation5 [shape = 's32[1]{0}', space=sflag, size = 0x4, scoped, tag = 'scoped memory for tpu_custom_call.1']
    #allocation6 [shape = 'u8[512]{0}', space=vmem, size = 0x400, scoped, tag = 'output window, operand 0, single buffered']
    %8 = vsyncpa [#allocation4], 0
    %9 = vsyncpa [#allocation5], 0
    // Predicated region
    $region2: #{tpu_custom_call.1} parent=1 // pred_check
      _
    $region3: #{tpu_custom_call.1} parent=1 // pred_check_branch
      %11 = sbr.rel (0) target = $region5
    $region4: #{tpu_custom_call.1} parent=1 // pred_region
      _
    $region5: #{tpu_custom_call.1} parent=1 // pred_fallthru
      _
    // Predicated region
    $region6: #{tpu_custom_call.1} parent=1 // pred_check
      _
    $region7: #{tpu_custom_call.1} parent=1 // pred_check_branch
      %13 = sbr.rel (0) target = $region9
    $region8: #{tpu_custom_call.1} parent=1 // pred_region
      %s15 = ssub.s32 128, 128
      %16 = vsyncadd [#allocation4], %s15
      %s18 = sshll.u32 [#allocation3], 4
      %s19 = int_to_ptr.vmem [resolvable:$true] %s18
      %21 = dma.hbm_to_vmem [thread:$0]  %s1, 128, %s19, [#allocation4]
    $region9: #{tpu_custom_call.1} parent=1 // pred_fallthru
      _
    // Predicated region
    $region10: #{tpu_custom_call.1} parent=1 // pred_check
      _
    $region11: #{tpu_custom_call.1} parent=1 // pred_check_branch
      %23 = sbr.rel (0) target = $region13
    $region12: #{tpu_custom_call.1} parent=1 // pred_region
      _
    $region13: #{tpu_custom_call.1} parent=1 // pred_fallthru
      _
    // Predicated region
    $region14: #{tpu_custom_call.1} parent=1 // pred_check
      _
    $region15: #{tpu_custom_call.1} parent=1 // pred_check_branch
      %25 = sbr.rel (0) target = $region17
    $region16: #{tpu_custom_call.1} parent=1 // pred_region
      %26 = dma.done [#allocation4], 128
    $region17: #{tpu_custom_call.1} parent=1 // pred_fallthru
      _
    %p27 = scmp.eq.s32.totalorder 0, 0
    // Predicated region
    $region18: #{tpu_custom_call.1} parent=1 // pred_check
      %p28 = pneg %p27
    $region19: #{tpu_custom_call.1} parent=1 // pred_check_branch
      %30 = sbr.rel (%p28) target = $region21
    $region20: #{tpu_custom_call.1} parent=1 // pred_region
      %vm31 = vcmask 0
      %32 = vst.msk [vmem:[#allocation2] sm:$0x1] %vm31, 0.0
    $region21: #{tpu_custom_call.1} parent=1 // pred_fallthru
      _
    %v33 = vld [vmem:[%s0] sm:$0xff]
    %v34 = vld [vmem:[#allocation3] sm:$0xff]
    %v35 = vld [vmem:[%s2] sm:$0xff]
    %v36 = vsub.f32 %v33, %v34
    %v37 = vadd.f32 %v36, 1e-06
    %v38 = vmul.f32 %v37, %v37
    %vm39 = vcmask 261120
    %v40 = vsel %vm39, %v38, 0.0
    %41 = vadd.xlane.f32.xlu0 %v40
    %v42 = vpop.xlane.xlu0 %41
    %v43 = vrsqrt.pop %v42
    %v44 = vmul.f32 %v42, %v43
    %vm45 = vcmp.eq.f32.partialorder %v42, inf
    %v46 = vsel %vm45, %v42, %v44
    %vm47 = vcmp.eq.f32.partialorder %v42, 0.0
    %v48 = vand.u32 %v42, 2147483648
    %v49 = vsel %vm47, %v48, %v46
    %v50 = vsub.f32 2.0, %v49
    %v51 = vmax.f32 %v50, 0.0
    %v52 = vsub.f32 1.0, %v35
    %v53 = vmul.f32 %v52, %v42
    %v54 = vmul.f32 %v51, %v51
    %v55 = vmul.f32 %v35, %v54
    %v56 = vadd.f32 %v53, %v55
    %v57 = vld [vmem:[#allocation2] sm:$0x1]
    %vm58 = vcmask 7168
    %v59 = vsel %vm58, %v56, 0.0
    %v60 = vrot.slane %v59, 4
    %v61 = vadd.f32 %v59, %v60
    %v62 = vrot.slane %v61, 2
    %v63 = vadd.f32 %v61, %v62
    %v64 = vrot.slane %v63, 1
    %v65 = vadd.f32 %v63, %v64
    %v66 = vadd.f32 %v57, %v65
    %vm67 = vcmask 0
    %68 = vst.msk [vmem:[#allocation2] sm:$0x1] %vm67, %v66
    // Predicated region
    $region22: #{tpu_custom_call.1} parent=1 // pred_check
      %p69 = pneg %p27
    $region23: #{tpu_custom_call.1} parent=1 // pred_check_branch
      %71 = sbr.rel (%p69) target = $region25
    $region24: #{tpu_custom_call.1} parent=1 // pred_region
      %v72 = vld [vmem:[#allocation2] sm:$0x1]
      %v73 = vmul.f32 %v72, 0.125
      %74 = vst.msk [vmem:[#allocation6] sm:$0x1] %vm67, %v73
    $region25: #{tpu_custom_call.1} parent=1 // pred_fallthru
      _
    // Predicated region
    $region26: #{tpu_custom_call.1} parent=1 // pred_check
      _
    $region27: #{tpu_custom_call.1} parent=1 // pred_check_branch
      %76 = sbr.rel (0) target = $region29
    $region28: #{tpu_custom_call.1} parent=1 // pred_region
      %s78 = ssub.s32 16, 16
      %79 = vsyncadd [#allocation5], %s78
      %s81 = sshll.u32 [#allocation6], 4
      %s82 = int_to_ptr.vmem [resolvable:$true] %s81
      %84 = dma.vmem_to_hbm [thread:$0]  %s82, 16, %s3, [#allocation5]
    $region29: #{tpu_custom_call.1} parent=1 // pred_fallthru
      _
    // Predicated region
    $region30: #{tpu_custom_call.1} parent=1 // pred_check
      _
    $region31: #{tpu_custom_call.1} parent=1 // pred_check_branch
      %86 = sbr.rel (0) target = $region33
    $region32: #{tpu_custom_call.1} parent=1 // pred_region
      %87 = dma.done [#allocation5], 16
    $region33: #{tpu_custom_call.1} parent=1 // pred_fallthru
      _
    %88 = vsyncpa [#allocation4], 1
    %89 = vsyncpa [#allocation5], 1

</llo_original>
